<compile_context>
chip_gen: v6e
topology: v6e:2x2x1
jax: 0.10.0
libtpu: 0.0.40
codegen_flags: <defaults>
</compile_context>

<pallas_src>
import math

import jax
import jax.numpy as jnp
from jax.experimental import pallas as pl
from jax.experimental.pallas import tpu as pltpu

N_COWS = 2
INPUT_SIZE = 1 + N_COWS            # agent + cows
IN_FEATURES = INPUT_SIZE * 2       # fc1.in_features = 6
HIDDEN = 128
OUTPUT_SIZE = 4
LANE = 128
TB_MAX = 1024                      # batch-tile rows (multiple of 128)


def dqn_kernel(x_ref, w1_ref, b1_ref, w2_ref, b2_ref, out_ref):
    # x_ref:  (IN_FEATURES, TB)  feature-major batch tile
    # w1_ref: (HIDDEN, IN_FEATURES)   b1_ref: (HIDDEN, 1)
    # w2_ref: (OUTPUT_SIZE, HIDDEN)   b2_ref: (OUTPUT_SIZE, 1)
    # out_ref: (OUTPUT_SIZE, TB)
    x = x_ref[...]
    h = jnp.dot(w1_ref[...], x, preferred_element_type=jnp.float32) + b1_ref[...]
    h = jax.nn.sigmoid(h)                                   # f32 EUP path
    o = jnp.dot(w2_ref[...], h, preferred_element_type=jnp.float32) + b2_ref[...]
    out_ref[...] = o.astype(out_ref.dtype)


def _preprocess(x):
    """Faithful replica of the sequential in-place loop in DQN.forward."""
    for i in range(N_COWS):
        x = x.at[i + 0].set(x[i + 0] - x[0])
        x = x.at[i + 1].set(x[i + 1] - x[1])
    return x


def dqn_forward(x, w1, b1, w2, b2):
    """Replicates DQN.forward. Weights are in PyTorch (out_features, in_features) layout."""
    x = _preprocess(x)
    flat = x.reshape(-1, IN_FEATURES).astype(jnp.float32)    # (B, 6)
    B = flat.shape[0]

    # Batch tile: multiple of 128 lanes, capped at TB_MAX; pad B up to a
    # multiple of TB (pad columns are zeros, sliced off after the kernel).
    TB = min(TB_MAX, pl.cdiv(B, LANE) * LANE)
    Bp = pl.cdiv(B, TB) * TB
    x_fm = jnp.pad(flat.T, ((0, 0), (0, Bp - B)))            # (6, Bp) feature-major

    out_fm = pl.pallas_call(
        dqn_kernel,
        out_shape=jax.ShapeDtypeStruct((OUTPUT_SIZE, Bp), jnp.float32),
        grid_spec=pltpu.PrefetchScalarGridSpec(
            num_scalar_prefetch=0,
            grid=(Bp // TB,),
            in_specs=[
                pl.BlockSpec((IN_FEATURES, TB), lambda i: (0, i)),      # batch tile
                pl.BlockSpec((HIDDEN, IN_FEATURES), lambda i: (0, 0)),  # VMEM-resident
                pl.BlockSpec((HIDDEN, 1), lambda i: (0, 0)),            # VMEM-resident
                pl.BlockSpec((OUTPUT_SIZE, HIDDEN), lambda i: (0, 0)),  # VMEM-resident
                pl.BlockSpec((OUTPUT_SIZE, 1), lambda i: (0, 0)),       # VMEM-resident
            ],
            out_specs=pl.BlockSpec((OUTPUT_SIZE, TB), lambda i: (0, i)),
        ),
        compiler_params=pltpu.CompilerParams(
            dimension_semantics=("parallel",),   # v7x: shard batch tiles over 2 TCs
        ),
    )(x_fm, w1, b1.reshape(HIDDEN, 1), w2, b2.reshape(OUTPUT_SIZE, 1))

    return out_fm[:, :B].T                                   # (B, OUTPUT_SIZE)


def init_params(key):
    """nn.Linear.reset_parameters: U(-1/sqrt(fan_in), 1/sqrt(fan_in)); weights (out, in)."""
    k1, k2, k3, k4 = jax.random.split(key, 4)
    bound1 = 1.0 / math.sqrt(IN_FEATURES)
    bound2 = 1.0 / math.sqrt(HIDDEN)
    w1 = jax.random.uniform(k1, (HIDDEN, IN_FEATURES), jnp.float32, -bound1, bound1)
    b1 = jax.random.uniform(k2, (HIDDEN,), jnp.float32, -bound1, bound1)
    w2 = jax.random.uniform(k3, (OUTPUT_SIZE, HIDDEN), jnp.float32, -bound2, bound2)
    b2 = jax.random.uniform(k4, (OUTPUT_SIZE,), jnp.float32, -bound2, bound2)
    return w1, b1, w2, b2


if __name__ == "__main__":
    key = jax.random.PRNGKey(0)
    pkey, xkey = jax.random.split(key)
    w1, b1, w2, b2 = init_params(pkey)

    # Batch of 8 states, each [agent_x, agent_y, cow1_x, cow1_y, cow2_x, cow2_y]
    x = jax.random.uniform(xkey, (8, IN_FEATURES), jnp.float32, 0.0, 10.0)

    out = dqn_forward(x, w1, b1, w2, b2)
    jax.block_until_ready(out)

    # Pure-JAX reference for the same math.
    xr = _preprocess(x).reshape(-1, IN_FEATURES)
    ref = jax.nn.sigmoid(xr @ w1.T + b1) @ w2.T + b2
    assert out.shape == ref.shape
    assert jnp.allclose(out, ref, atol=1e-5), "mismatch vs reference"

    print("KERNEL_OK")
</pallas_src>

<mosaic_0001>
module attributes {stable_mosaic.version = 11 : i64} {
  func.func @dqn_kernel(%arg0: i32, %arg1: memref<6x128xf32, #tpu.memory_space<vmem>>, %arg2: memref<128x6xf32, #tpu.memory_space<vmem>>, %arg3: memref<128x1xf32, #tpu.memory_space<vmem>>, %arg4: memref<4x128xf32, #tpu.memory_space<vmem>>, %arg5: memref<4x1xf32, #tpu.memory_space<vmem>>, %arg6: memref<4x128xf32, #tpu.memory_space<vmem>>) attributes {dimension_semantics = [#tpu.dimension_semantics<parallel>], iteration_bounds = array<i64: 1>, scalar_prefetch = 0 : i64, scratch_operands = 0 : i64, tpu.core_type = #tpu.core_type<tc>, window_params = [{transform_indices = @transform_0, window_bounds = array<i64: 6, 128>}, {pipeline_mode = #tpu.pipeline_mode<synchronous>, transform_indices = @transform_1, window_bounds = array<i64: 128, 6>}, {pipeline_mode = #tpu.pipeline_mode<synchronous>, transform_indices = @transform_2, window_bounds = array<i64: 128, 1>}, {pipeline_mode = #tpu.pipeline_mode<synchronous>, transform_indices = @transform_3, window_bounds = array<i64: 4, 128>}, {pipeline_mode = #tpu.pipeline_mode<synchronous>, transform_indices = @transform_4, window_bounds = array<i64: 4, 1>}, {transform_indices = @transform_5, window_bounds = array<i64: 4, 128>}]} {
    %c0 = arith.constant 0 : index
    %c0_0 = arith.constant 0 : index
    %0 = vector.load %arg1[%c0, %c0_0] : memref<6x128xf32, #tpu.memory_space<vmem>>, vector<6x128xf32>
    %c0_1 = arith.constant 0 : index
    %c0_2 = arith.constant 0 : index
    %1 = vector.load %arg2[%c0_1, %c0_2] : memref<128x6xf32, #tpu.memory_space<vmem>>, vector<128x6xf32>
    %cst = arith.constant dense<0.000000e+00> : vector<128x128xf32>
    %2 = tpu.matmul %1, %0, %cst {dimension_numbers = #tpu.dot_dimension_numbers<[1], [0], [0], [1], [0, 0, 1, 1], [], []>} : vector<128x6xf32>, vector<6x128xf32>, vector<128x128xf32> -> vector<128x128xf32>
    %c0_3 = arith.constant 0 : index
    %c0_4 = arith.constant 0 : index
    %3 = vector.load %arg3[%c0_3, %c0_4] : memref<128x1xf32, #tpu.memory_space<vmem>>, vector<128x1xf32>
    %4 = vector.broadcast %3 : vector<128x1xf32> to vector<128x128xf32>
    %5 = arith.addf %2, %4 : vector<128x128xf32>
    %6 = arith.negf %5 : vector<128x128xf32>
    %7 = math.exp %6 : vector<128x128xf32>
    %cst_5 = arith.constant 1.000000e+00 : f32
    %8 = vector.broadcast %cst_5 : f32 to vector<128x128xf32>
    %9 = arith.addf %8, %7 : vector<128x128xf32>
    %10 = arith.divf %8, %9 : vector<128x128xf32>
    %c0_6 = arith.constant 0 : index
    %c0_7 = arith.constant 0 : index
    %11 = vector.load %arg4[%c0_6, %c0_7] : memref<4x128xf32, #tpu.memory_space<vmem>>, vector<4x128xf32>
    %cst_8 = arith.constant dense<0.000000e+00> : vector<4x128xf32>
    %12 = tpu.matmul %11, %10, %cst_8 {dimension_numbers = #tpu.dot_dimension_numbers<[1], [0], [0], [1], [0, 0, 1, 1], [], []>} : vector<4x128xf32>, vector<128x128xf32>, vector<4x128xf32> -> vector<4x128xf32>
    %c0_9 = arith.constant 0 : index
    %c0_10 = arith.constant 0 : index
    %13 = vector.load %arg5[%c0_9, %c0_10] : memref<4x1xf32, #tpu.memory_space<vmem>>, vector<4x1xf32>
    %14 = vector.broadcast %13 : vector<4x1xf32> to vector<4x128xf32>
    %15 = arith.addf %12, %14 : vector<4x128xf32>
    %c0_11 = arith.constant 0 : index
    %c0_12 = arith.constant 0 : index
    %16 = vector.load %arg6[%c0_11, %c0_12] : memref<4x128xf32, #tpu.memory_space<vmem>>, vector<4x128xf32>
    tpu.vector_store %arg6[%c0_11, %c0_12], %15 {strides = array<i32>} : memref<4x128xf32, #tpu.memory_space<vmem>>, vector<4x128xf32>,
    return
  }
  func.func @transform_0(%arg0: i32) -> (i32, i32) {
    %c0_i32 = arith.constant 0 : i32
    %c0_i32_0 = arith.constant 0 : i32
    return %c0_i32, %arg0 : i32, i32
  }
  func.func @transform_1(%arg0: i32) -> (i32, i32) {
    %c0_i32 = arith.constant 0 : i32
    %c0_i32_0 = arith.constant 0 : i32
    %c0_i32_1 = arith.constant 0 : i32
    return %c0_i32, %c0_i32_0 : i32, i32
  }
  func.func @transform_2(%arg0: i32) -> (i32, i32) {
    %c0_i32 = arith.constant 0 : i32
    %c0_i32_0 = arith.constant 0 : i32
    %c0_i32_1 = arith.constant 0 : i32
    return %c0_i32, %c0_i32_0 : i32, i32
  }
  func.func @transform_3(%arg0: i32) -> (i32, i32) {
    %c0_i32 = arith.constant 0 : i32
    %c0_i32_0 = arith.constant 0 : i32
    %c0_i32_1 = arith.constant 0 : i32
    return %c0_i32, %c0_i32_0 : i32, i32
  }
  func.func @transform_4(%arg0: i32) -> (i32, i32) {
    %c0_i32 = arith.constant 0 : i32
    %c0_i32_0 = arith.constant 0 : i32
    %c0_i32_1 = arith.constant 0 : i32
    return %c0_i32, %c0_i32_0 : i32, i32
  }
  func.func @transform_5(%arg0: i32) -> (i32, i32) {
    %c0_i32 = arith.constant 0 : i32
    %c0_i32_0 = arith.constant 0 : i32
    return %c0_i32, %arg0 : i32, i32
  }
}

</mosaic_0001>

<llo_original>
// kernel: tpu_custom_call.1
$region0: #{tpu_custom_call.1}
  #allocation0 [shape = 'u32[]', space=smem, size = 0x4, offset = 0x4, fixed_abs, tag = 'smem constant byte address 0x4 - core index']
  #allocation1 [shape = 'u32[144,128]{1,0:T(1,128)}', space=vmem, size = 0x12000, scoped, tag = 'internal scratch']
  %s0 = inlined_call_operand.vmem [shape: f32[6,128], index: 0, kind: input, shape index: {}]
  %s1 = inlined_call_operand.vmem [shape: f32[128,6], index: 1, kind: input, shape index: {}]
  %s2 = inlined_call_operand.vmem [shape: f32[128,1], index: 2, kind: input, shape index: {}]
  %s3 = inlined_call_operand.vmem [shape: f32[4,128], index: 3, kind: input, shape index: {}]
  %s4 = inlined_call_operand.vmem [shape: f32[4,1], index: 4, kind: input, shape index: {}]
  %s5 = inlined_call_operand.hbm [shape: f32[4,128], index: 5, kind: output, shape index: {}]
  %s6 = sld [smem:[#allocation0]]
  $region30: #{tpu_custom_call.1} parent=0
    _
  %s8 = ssub.s32 1, %s6
  %s9 = scalar_select 0, %s8, %s6
  $region1: #{tpu_custom_call.1} parent=0
    #allocation2 [shape = 'u8[2048]{0}', space=vmem, size = 0x800, scoped, tag = 'output window, operand 0, single buffered']
    #allocation3 [shape = 's32[1]{0}', space=sflag, size = 0x4, scoped, tag = 'scoped memory for tpu_custom_call.1']
    %10 = vsyncpa [#allocation3], 0
    // Predicated region
    $region2: #{tpu_custom_call.1} parent=1 // pred_check
      _
    $region3: #{tpu_custom_call.1} parent=1 // pred_check_branch
      %12 = sbr.rel (0) target = $region5
    $region4: #{tpu_custom_call.1} parent=1 // pred_region
      _
    $region5: #{tpu_custom_call.1} parent=1 // pred_fallthru
      _
    // Predicated region
    $region6: #{tpu_custom_call.1} parent=1 // pred_check
      _
    $region7: #{tpu_custom_call.1} parent=1 // pred_check_branch
      %14 = sbr.rel (0) target = $region9
    $region8: #{tpu_custom_call.1} parent=1 // pred_region
      _
    $region9: #{tpu_custom_call.1} parent=1 // pred_fallthru
      _
    // Predicated region
    $region10: #{tpu_custom_call.1} parent=1 // pred_check
      _
    $region11: #{tpu_custom_call.1} parent=1 // pred_check_branch
      %16 = sbr.rel (0) target = $region13
    $region12: #{tpu_custom_call.1} parent=1 // pred_region
      _
    $region13: #{tpu_custom_call.1} parent=1 // pred_fallthru
      _
    // Predicated region
    $region14: #{tpu_custom_call.1} parent=1 // pred_check
      _
    $region15: #{tpu_custom_call.1} parent=1 // pred_check_branch
      %18 = sbr.rel (0) target = $region17
    $region16: #{tpu_custom_call.1} parent=1 // pred_region
      _
    $region17: #{tpu_custom_call.1} parent=1 // pred_fallthru
      _
    // Predicated region
    $region18: #{tpu_custom_call.1} parent=1 // pred_check
      _
    $region19: #{tpu_custom_call.1} parent=1 // pred_check_branch
      %20 = sbr.rel (0) target = $region21
    $region20: #{tpu_custom_call.1} parent=1 // pred_region
      _
    $region21: #{tpu_custom_call.1} parent=1 // pred_fallthru
      _
    %v21 = vld [vmem:[%s0] sm:$0x3f]
    %v22 = vld [vmem:[%s1] sm:$0xff]
    %v23 = vld [vmem:[%s1 + $0x8] sm:$0xff]
    %v24 = vld [vmem:[%s1 + $0x10] sm:$0xff]
    %v25 = vld [vmem:[%s1 + $0x18] sm:$0xff]
    %v26 = vld [vmem:[%s1 + $0x20] sm:$0xff]
    %v27 = vld [vmem:[%s1 + $0x28] sm:$0xff]
    %v28 = vld [vmem:[%s1 + $0x30] sm:$0xff]
    %v29 = vld [vmem:[%s1 + $0x38] sm:$0xff]
    %v30 = vld [vmem:[%s1 + $0x40] sm:$0xff]
    %v31 = vld [vmem:[%s1 + $0x48] sm:$0xff]
    %v32 = vld [vmem:[%s1 + $0x50] sm:$0xff]
    %v33 = vld [vmem:[%s1 + $0x58] sm:$0xff]
    %v34 = vld [vmem:[%s1 + $0x60] sm:$0xff]
    %v35 = vld [vmem:[%s1 + $0x68] sm:$0xff]
    %v36 = vld [vmem:[%s1 + $0x70] sm:$0xff]
    %v37 = vld [vmem:[%s1 + $0x78] sm:$0xff]
    %v38 = vld [vmem:[%s2] sm:$0xff]
    %v39 = vld [vmem:[%s2 + $0x8] sm:$0xff]
    %v40 = vld [vmem:[%s2 + $0x10] sm:$0xff]
    %v41 = vld [vmem:[%s2 + $0x18] sm:$0xff]
    %v42 = vld [vmem:[%s2 + $0x20] sm:$0xff]
    %v43 = vld [vmem:[%s2 + $0x28] sm:$0xff]
    %v44 = vld [vmem:[%s2 + $0x30] sm:$0xff]
    %v45 = vld [vmem:[%s2 + $0x38] sm:$0xff]
    %v46 = vld [vmem:[%s2 + $0x40] sm:$0xff]
    %v47 = vld [vmem:[%s2 + $0x48] sm:$0xff]
    %v48 = vld [vmem:[%s2 + $0x50] sm:$0xff]
    %v49 = vld [vmem:[%s2 + $0x58] sm:$0xff]
    %v50 = vld [vmem:[%s2 + $0x60] sm:$0xff]
    %v51 = vld [vmem:[%s2 + $0x68] sm:$0xff]
    %v52 = vld [vmem:[%s2 + $0x70] sm:$0xff]
    %v53 = vld [vmem:[%s2 + $0x78] sm:$0xff]
    %55 = vset.pattern.permute.xlu0 0
    %56 = vperm.xlu0 %55, %v38
    %v57 = vpop.permute.xlu0 %56
    %60 = vset.pattern.permute.xlu0 0
    %61 = vperm.xlu0 %60, %v39
    %v62 = vpop.permute.xlu0 %61
    %65 = vset.pattern.permute.xlu0 0
    %66 = vperm.xlu0 %65, %v40
    %v67 = vpop.permute.xlu0 %66
    %70 = vset.pattern.permute.xlu0 0
    %71 = vperm.xlu0 %70, %v41
    %v72 = vpop.permute.xlu0 %71
    %75 = vset.pattern.permute.xlu0 0
    %76 = vperm.xlu0 %75, %v42
    %v77 = vpop.permute.xlu0 %76
    %80 = vset.pattern.permute.xlu0 0
    %81 = vperm.xlu0 %80, %v43
    %v82 = vpop.permute.xlu0 %81
    %85 = vset.pattern.permute.xlu0 0
    %86 = vperm.xlu0 %85, %v44
    %v87 = vpop.permute.xlu0 %86
    %90 = vset.pattern.permute.xlu0 0
    %91 = vperm.xlu0 %90, %v45
    %v92 = vpop.permute.xlu0 %91
    %95 = vset.pattern.permute.xlu0 0
    %96 = vperm.xlu0 %95, %v46
    %v97 = vpop.permute.xlu0 %96
    %100 = vset.pattern.permute.xlu0 0
    %101 = vperm.xlu0 %100, %v47
    %v102 = vpop.permute.xlu0 %101
    %105 = vset.pattern.permute.xlu0 0
    %106 = vperm.xlu0 %105, %v48
    %v107 = vpop.permute.xlu0 %106
    %110 = vset.pattern.permute.xlu0 0
    %111 = vperm.xlu0 %110, %v49
    %v112 = vpop.permute.xlu0 %111
    %115 = vset.pattern.permute.xlu0 0
    %116 = vperm.xlu0 %115, %v50
    %v117 = vpop.permute.xlu0 %116
    %120 = vset.pattern.permute.xlu0 0
    %121 = vperm.xlu0 %120, %v51
    %v122 = vpop.permute.xlu0 %121
    %125 = vset.pattern.permute.xlu0 0
    %126 = vperm.xlu0 %125, %v52
    %v127 = vpop.permute.xlu0 %126
    %130 = vset.pattern.permute.xlu0 0
    %131 = vperm.xlu0 %130, %v53
    %v132 = vpop.permute.xlu0 %131
    %vm134 = vcmask 48128
    %v136 = vsel %vm134, %v22, 0
    %v139 = vsel %vm134, %v23, 0
    %v142 = vsel %vm134, %v24, 0
    %v145 = vsel %vm134, %v25, 0
    %v148 = vsel %vm134, %v26, 0
    %v151 = vsel %vm134, %v27, 0
    %v154 = vsel %vm134, %v28, 0
    %v157 = vsel %vm134, %v29, 0
    %v160 = vsel %vm134, %v30, 0
    %v163 = vsel %vm134, %v31, 0
    %v166 = vsel %vm134, %v32, 0
    %v169 = vsel %vm134, %v33, 0
    %v172 = vsel %vm134, %v34, 0
    %v175 = vsel %vm134, %v35, 0
    %v178 = vsel %vm134, %v36, 0
    %v181 = vsel %vm134, %v37, 0
    %vm183 = vcmask 1045504
    %v185 = vsel %vm183, %v21, 0
    %187 = vmatprep.subr.mxu0 0.0
    %188 = vmatpush1.msra.mxu0 0.0
    %189 = vmatprep.subr.mxu0 0.0
    %190 = vmatpush1.msra.mxu0 0.0
    %191 = vmatprep.subr.mxu0 0.0
    %192 = vmatpush1.msra.mxu0 0.0
    %193 = vmatprep.subr.mxu0 0.0
    %194 = vmatpush1.msra.mxu0 0.0
    %195 = vmatprep.subr.mxu0 0.0
    %196 = vmatpush1.msra.mxu0 0.0
    %197 = vmatprep.subr.mxu0 0.0
    %198 = vmatpush1.msra.mxu0 0.0
    %199 = vmatprep.subr.mxu0 0.0
    %200 = vmatpush1.msra.mxu0 0.0
    %201 = vmatprep.subr.mxu0 0.0
    %202 = vmatpush1.msra.mxu0 0.0
    %203 = vmatprep.subr.mxu0 0.0
    %204 = vmatpush1.msra.mxu0 0.0
    %205 = vmatprep.subr.mxu0 0.0
    %206 = vmatpush1.msra.mxu0 0.0
    %207 = vmatprep.subr.mxu0 0.0
    %208 = vmatpush1.msra.mxu0 0.0
    %209 = vmatprep.subr.mxu0 0.0
    %210 = vmatpush1.msra.mxu0 0.0
    %211 = vmatprep.subr.mxu0 0.0
    %212 = vmatpush1.msra.mxu0 0.0
    %213 = vmatprep.subr.mxu0 0.0
    %214 = vmatpush1.msra.mxu0 0.0
    %215 = vmatprep.subr.mxu0 0.0
    %216 = vmatpush1.msra.mxu0 0.0
    %217 = vmatprep.subr.mxu0 0.0
    %218 = vmatpush1.msra.mxu0 %v185
    %219 = vmatprep.subr.mxu0 0.0
    %220 = vmatpush2.msra.mxu0 0.0
    %221 = vmatprep.subr.mxu0 0.0
    %222 = vmatpush2.msra.mxu0 0.0
    %223 = vmatprep.subr.mxu0 0.0
    %224 = vmatpush2.msra.mxu0 0.0
    %225 = vmatprep.subr.mxu0 0.0
    %226 = vmatpush2.msra.mxu0 0.0
    %227 = vmatprep.subr.mxu0 0.0
    %228 = vmatpush2.msra.mxu0 0.0
    %229 = vmatprep.subr.mxu0 0.0
    %230 = vmatpush2.msra.mxu0 0.0
    %231 = vmatprep.subr.mxu0 0.0
    %232 = vmatpush2.msra.mxu0 0.0
    %233 = vmatprep.subr.mxu0 0.0
    %234 = vmatpush2.msra.mxu0 0.0
    %235 = vmatprep.subr.mxu0 0.0
    %236 = vmatpush2.msra.mxu0 0.0
    %237 = vmatprep.subr.mxu0 0.0
    %238 = vmatpush2.msra.mxu0 0.0
    %239 = vmatprep.subr.mxu0 0.0
    %240 = vmatpush2.msra.mxu0 0.0
    %241 = vmatprep.subr.mxu0 0.0
    %242 = vmatpush2.msra.mxu0 0.0
    %243 = vmatprep.subr.mxu0 0.0
    %244 = vmatpush2.msra.mxu0 0.0
    %245 = vmatprep.subr.mxu0 0.0
    %246 = vmatpush2.msra.mxu0 0.0
    %247 = vmatprep.subr.mxu0 0.0
    %248 = vmatpush2.msra.mxu0 0.0
    %249 = vmatprep.subr.mxu0 0.0
    %250 = vmatpush2.msra.mxu0 0.0
    %251 = vmatprep.mubr.f32.mxu0 0.0
    %252 = vmatmul.mubr.f32.gmra.mxu0 %v136
    %v253 = vpop.f32.mrf.mxu0
    %v254 = vadd.f32 %v57, %v253
    %v255 = vpop.f32.mrf.mxu0
    %256 = vmatprep.mubr.f32.mxu0 0.0
    %257 = vmatmul.mubr.f32.gmra.mxu0 %v139
    %v258 = vpop.f32.mrf.mxu0
    %v259 = vadd.f32 %v62, %v258
    %v260 = vpop.f32.mrf.mxu0
    %261 = vmatprep.mubr.f32.mxu0 0.0
    %262 = vmatmul.mubr.f32.gmra.mxu0 %v142
    %v263 = vpop.f32.mrf.mxu0
    %v264 = vadd.f32 %v67, %v263
    %v265 = vpop.f32.mrf.mxu0
    %266 = vmatprep.mubr.f32.mxu0 0.0
    %267 = vmatmul.mubr.f32.gmra.mxu0 %v145
    %v268 = vpop.f32.mrf.mxu0
    %v269 = vadd.f32 %v72, %v268
    %v270 = vpop.f32.mrf.mxu0
    %271 = vmatprep.mubr.f32.mxu0 0.0
    %272 = vmatmul.mubr.f32.gmra.mxu0 %v148
    %v273 = vpop.f32.mrf.mxu0
    %v274 = vadd.f32 %v77, %v273
    %v275 = vpop.f32.mrf.mxu0
    %276 = vmatprep.mubr.f32.mxu0 0.0
    %277 = vmatmul.mubr.f32.gmra.mxu0 %v151
    %v278 = vpop.f32.mrf.mxu0
    %v279 = vadd.f32 %v82, %v278
    %v280 = vpop.f32.mrf.mxu0
    %281 = vmatprep.mubr.f32.mxu0 0.0
    %282 = vmatmul.mubr.f32.gmra.mxu0 %v154
    %v283 = vpop.f32.mrf.mxu0
    %v284 = vadd.f32 %v87, %v283
    %v285 = vpop.f32.mrf.mxu0
    %286 = vmatprep.mubr.f32.mxu0 0.0
    %287 = vmatmul.mubr.f32.gmra.mxu0 %v157
    %v288 = vpop.f32.mrf.mxu0
    %v289 = vadd.f32 %v92, %v288
    %v290 = vpop.f32.mrf.mxu0
    %291 = vmatprep.mubr.f32.mxu0 0.0
    %292 = vmatmul.mubr.f32.gmra.mxu0 %v160
    %v293 = vpop.f32.mrf.mxu0
    %v294 = vadd.f32 %v97, %v293
    %v295 = vpop.f32.mrf.mxu0
    %296 = vmatprep.mubr.f32.mxu0 0.0
    %297 = vmatmul.mubr.f32.gmra.mxu0 %v163
    %v298 = vpop.f32.mrf.mxu0
    %v299 = vadd.f32 %v102, %v298
    %v300 = vpop.f32.mrf.mxu0
    %301 = vmatprep.mubr.f32.mxu0 0.0
    %302 = vmatmul.mubr.f32.gmra.mxu0 %v166
    %v303 = vpop.f32.mrf.mxu0
    %v304 = vadd.f32 %v107, %v303
    %v305 = vpop.f32.mrf.mxu0
    %306 = vmatprep.mubr.f32.mxu0 0.0
    %307 = vmatmul.mubr.f32.gmra.mxu0 %v169
    %v308 = vpop.f32.mrf.mxu0
    %v309 = vadd.f32 %v112, %v308
    %v310 = vpop.f32.mrf.mxu0
    %311 = vmatprep.mubr.f32.mxu0 0.0
    %312 = vmatmul.mubr.f32.gmra.mxu0 %v172
    %v313 = vpop.f32.mrf.mxu0
    %v314 = vadd.f32 %v117, %v313
    %v315 = vpop.f32.mrf.mxu0
    %316 = vmatprep.mubr.f32.mxu0 0.0
    %317 = vmatmul.mubr.f32.gmra.mxu0 %v175
    %v318 = vpop.f32.mrf.mxu0
    %v319 = vadd.f32 %v122, %v318
    %v320 = vpop.f32.mrf.mxu0
    %321 = vmatprep.mubr.f32.mxu0 0.0
    %322 = vmatmul.mubr.f32.gmra.mxu0 %v178
    %v323 = vpop.f32.mrf.mxu0
    %v324 = vadd.f32 %v127, %v323
    %v325 = vpop.f32.mrf.mxu0
    %326 = vmatprep.mubr.f32.mxu0 0.0
    %327 = vmatmul.mubr.f32.gmra.mxu0 %v181
    %v328 = vpop.f32.mrf.mxu0
    %v329 = vadd.f32 %v132, %v328
    %v330 = vpop.f32.mrf.mxu0
    %331 = vdwg.mxu0
    %v332 = vxor.u32 %v254, 2147483648
    %v333 = vxor.u32 %v259, 2147483648
    %v334 = vxor.u32 %v264, 2147483648
    %v335 = vxor.u32 %v269, 2147483648
    %v336 = vxor.u32 %v274, 2147483648
    %v337 = vxor.u32 %v279, 2147483648
    %v338 = vxor.u32 %v284, 2147483648
    %v339 = vxor.u32 %v289, 2147483648
    %v340 = vxor.u32 %v294, 2147483648
    %v341 = vxor.u32 %v299, 2147483648
    %v342 = vxor.u32 %v304, 2147483648
    %v343 = vxor.u32 %v309, 2147483648
    %v344 = vxor.u32 %v314, 2147483648
    %v345 = vxor.u32 %v319, 2147483648
    %v346 = vxor.u32 %v324, 2147483648
    %v347 = vxor.u32 %v329, 2147483648
    %v348 = vmul.f32 %v332, 1.442695
    %v349 = vpow.pop %v348
    %v350 = vmul.f32 %v333, 1.442695
    %v351 = vpow.pop %v350
    %v352 = vmul.f32 %v334, 1.442695
    %v353 = vpow.pop %v352
    %v354 = vmul.f32 %v335, 1.442695
    %v355 = vpow.pop %v354
    %v356 = vmul.f32 %v336, 1.442695
    %v357 = vpow.pop %v356
    %v358 = vmul.f32 %v337, 1.442695
    %v359 = vpow.pop %v358
    %v360 = vmul.f32 %v338, 1.442695
    %v361 = vpow.pop %v360
    %v362 = vmul.f32 %v339, 1.442695
    %v363 = vpow.pop %v362
    %v364 = vmul.f32 %v340, 1.442695
    %v365 = vpow.pop %v364
    %v366 = vmul.f32 %v341, 1.442695
    %v367 = vpow.pop %v366
    %v368 = vmul.f32 %v342, 1.442695
    %v369 = vpow.pop %v368
    %v370 = vmul.f32 %v343, 1.442695
    %v371 = vpow.pop %v370
    %v372 = vmul.f32 %v344, 1.442695
    %v373 = vpow.pop %v372
    %v374 = vmul.f32 %v345, 1.442695
    %v375 = vpow.pop %v374
    %v376 = vmul.f32 %v346, 1.442695
    %v377 = vpow.pop %v376
    %v378 = vmul.f32 %v347, 1.442695
    %v379 = vpow.pop %v378
    %v380 = vadd.f32 %v349, 1.0
    %v381 = vadd.f32 %v351, 1.0
    %v382 = vadd.f32 %v353, 1.0
    %v383 = vadd.f32 %v355, 1.0
    %v384 = vadd.f32 %v357, 1.0
    %v385 = vadd.f32 %v359, 1.0
    %v386 = vadd.f32 %v361, 1.0
    %v387 = vadd.f32 %v363, 1.0
    %v388 = vadd.f32 %v365, 1.0
    %v389 = vadd.f32 %v367, 1.0
    %v390 = vadd.f32 %v369, 1.0
    %v391 = vadd.f32 %v371, 1.0
    %v392 = vadd.f32 %v373, 1.0
    %v393 = vadd.f32 %v375, 1.0
    %v394 = vadd.f32 %v377, 1.0
    %v395 = vadd.f32 %v379, 1.0
    %v396 = vrcp.pop %v380
    %v397 = vmul.f32 1.0, %v396
    %v398 = vrcp.pop %v381
    %v399 = vmul.f32 1.0, %v398
    %v400 = vrcp.pop %v382
    %v401 = vmul.f32 1.0, %v400
    %v402 = vrcp.pop %v383
    %v403 = vmul.f32 1.0, %v402
    %v404 = vrcp.pop %v384
    %v405 = vmul.f32 1.0, %v404
    %v406 = vrcp.pop %v385
    %v407 = vmul.f32 1.0, %v406
    %v408 = vrcp.pop %v386
    %v409 = vmul.f32 1.0, %v408
    %v410 = vrcp.pop %v387
    %v411 = vmul.f32 1.0, %v410
    %v412 = vrcp.pop %v388
    %v413 = vmul.f32 1.0, %v412
    %v414 = vrcp.pop %v389
    %v415 = vmul.f32 1.0, %v414
    %v416 = vrcp.pop %v390
    %v417 = vmul.f32 1.0, %v416
    %v418 = vrcp.pop %v391
    %v419 = vmul.f32 1.0, %v418
    %v420 = vrcp.pop %v392
    %v421 = vmul.f32 1.0, %v420
    %v422 = vrcp.pop %v393
    %v423 = vmul.f32 1.0, %v422
    %v424 = vrcp.pop %v394
    %v425 = vmul.f32 1.0, %v424
    %v426 = vrcp.pop %v395
    %v427 = vmul.f32 1.0, %v426
    %v428 = vld [vmem:[%s3] sm:$0xf]
    %v429 = vld [vmem:[%s4] sm:$0xf]
    %431 = vset.pattern.permute.xlu0 0
    %432 = vperm.xlu0 %431, %v429
    %v433 = vpop.permute.xlu0 %432
    %435 = vmatprep.subr.mxu0 0.0
    %436 = vmatpush1.msra.mxu0 %v427
    %437 = vmatprep.subr.mxu0 0.0
    %438 = vmatpush1.msra.mxu0 %v425
    %439 = vmatprep.subr.mxu0 0.0
    %440 = vmatpush1.msra.mxu0 %v423
    %441 = vmatprep.subr.mxu0 0.0
    %442 = vmatpush1.msra.mxu0 %v421
    %443 = vmatprep.subr.mxu0 0.0
    %444 = vmatpush1.msra.mxu0 %v419
    %445 = vmatprep.subr.mxu0 0.0
    %446 = vmatpush1.msra.mxu0 %v417
    %447 = vmatprep.subr.mxu0 0.0
    %448 = vmatpush1.msra.mxu0 %v415
    %449 = vmatprep.subr.mxu0 0.0
    %450 = vmatpush1.msra.mxu0 %v413
    %451 = vmatprep.subr.mxu0 0.0
    %452 = vmatpush1.msra.mxu0 %v411
    %453 = vmatprep.subr.mxu0 0.0
    %454 = vmatpush1.msra.mxu0 %v409
    %455 = vmatprep.subr.mxu0 0.0
    %456 = vmatpush1.msra.mxu0 %v407
    %457 = vmatprep.subr.mxu0 0.0
    %458 = vmatpush1.msra.mxu0 %v405
    %459 = vmatprep.subr.mxu0 0.0
    %460 = vmatpush1.msra.mxu0 %v403
    %461 = vmatprep.subr.mxu0 0.0
    %462 = vmatpush1.msra.mxu0 %v401
    %463 = vmatprep.subr.mxu0 0.0
    %464 = vmatpush1.msra.mxu0 %v399
    %465 = vmatprep.subr.mxu0 0.0
    %466 = vmatpush1.msra.mxu0 %v397
    %467 = vmatprep.subr.mxu0 0.0
    %468 = vmatpush2.msra.mxu0 0.0
    %469 = vmatprep.subr.mxu0 0.0
    %470 = vmatpush2.msra.mxu0 0.0
    %471 = vmatprep.subr.mxu0 0.0
    %472 = vmatpush2.msra.mxu0 0.0
    %473 = vmatprep.subr.mxu0 0.0
    %474 = vmatpush2.msra.mxu0 0.0
    %475 = vmatprep.subr.mxu0 0.0
    %476 = vmatpush2.msra.mxu0 0.0
    %477 = vmatprep.subr.mxu0 0.0
    %478 = vmatpush2.msra.mxu0 0.0
    %479 = vmatprep.subr.mxu0 0.0
    %480 = vmatpush2.msra.mxu0 0.0
    %481 = vmatprep.subr.mxu0 0.0
    %482 = vmatpush2.msra.mxu0 0.0
    %483 = vmatprep.subr.mxu0 0.0
    %484 = vmatpush2.msra.mxu0 0.0
    %485 = vmatprep.subr.mxu0 0.0
    %486 = vmatpush2.msra.mxu0 0.0
    %487 = vmatprep.subr.mxu0 0.0
    %488 = vmatpush2.msra.mxu0 0.0
    %489 = vmatprep.subr.mxu0 0.0
    %490 = vmatpush2.msra.mxu0 0.0
    %491 = vmatprep.subr.mxu0 0.0
    %492 = vmatpush2.msra.mxu0 0.0
    %493 = vmatprep.subr.mxu0 0.0
    %494 = vmatpush2.msra.mxu0 0.0
    %495 = vmatprep.subr.mxu0 0.0
    %496 = vmatpush2.msra.mxu0 0.0
    %497 = vmatprep.subr.mxu0 0.0
    %498 = vmatpush2.msra.mxu0 0.0
    %499 = vmatprep.mubr.f32.mxu0 0.0
    %500 = vmatmul.mubr.f32.gmra.mxu0 %v428
    %v501 = vpop.f32.mrf.mxu0
    %v502 = vadd.f32 %v433, %v501
    %v503 = vpop.f32.mrf.mxu0
    %504 = vdwg.mxu0
    %505 = vst [vmem:[#allocation2] sm:$0xf] %v502
    // Predicated region
    $region22: #{tpu_custom_call.1} parent=1 // pred_check
      _
    $region23: #{tpu_custom_call.1} parent=1 // pred_check_branch
      %507 = sbr.rel (0) target = $region25
    $region24: #{tpu_custom_call.1} parent=1 // pred_region
      %s509 = ssub.s32 64, 64
      %510 = vsyncadd [#allocation3], %s509
      %s512 = sshll.u32 [#allocation2], 4
      %s513 = int_to_ptr.vmem [resolvable:$true] %s512
      %515 = dma.vmem_to_hbm [thread:$0]  %s513, 64, %s5, [#allocation3]
    $region25: #{tpu_custom_call.1} parent=1 // pred_fallthru
      _
    // Predicated region
    $region26: #{tpu_custom_call.1} parent=1 // pred_check
      _
    $region27: #{tpu_custom_call.1} parent=1 // pred_check_branch
      %517 = sbr.rel (0) target = $region29
    $region28: #{tpu_custom_call.1} parent=1 // pred_region
      %518 = dma.done [#allocation3], 64
    $region29: #{tpu_custom_call.1} parent=1 // pred_fallthru
      _
    %519 = vsyncpa [#allocation3], 1

</llo_original>
